<compile_context>
chip_gen: v6e
topology: v6e:2x2x1
jax: 0.10.0
libtpu: 0.0.40
codegen_flags: <defaults>
</compile_context>

<pallas_src>
import jax
import jax.numpy as jnp
from jax.experimental import pallas as pl
from jax.experimental.pallas import tpu as pltpu

LANE = 128      # lane width: every feature dim is padded to a multiple of this
SUBLANE = 8     # sublane granularity for the batch tile


def _round_up(n, m):
    return ((n + m - 1) // m) * m


def _pad2d(a, rows, cols):
    return jnp.pad(a, ((0, rows - a.shape[0]), (0, cols - a.shape[1])))


def dqn_kernel(x_ref, w1_ref, b1_ref, w2_ref, b2_ref, w3_ref, b3_ref, o_ref):
    # x tile: (TILE_B, D_in_pad); bf16 when fed optimally (astype is a no-op),
    # accumulation stays f32 via preferred_element_type.
    x = x_ref[...].astype(jnp.bfloat16)
    # fc1 + relu
    h1 = jnp.dot(x, w1_ref[...], preferred_element_type=jnp.float32)
    h1 = jnp.maximum(h1 + b1_ref[...], 0.0)                          # (TILE_B, 128)
    # fc2 + relu
    h2 = jnp.dot(h1.astype(jnp.bfloat16), w2_ref[...],
                 preferred_element_type=jnp.float32)
    h2 = jnp.maximum(h2 + b2_ref[...], 0.0)                          # (TILE_B, 128)
    # out (no activation) — lane-dense 128-wide bf16 store; real Q-values in [:, :2]
    o = jnp.dot(h2.astype(jnp.bfloat16), w3_ref[...],
                preferred_element_type=jnp.float32)
    o_ref[...] = (o + b3_ref[...]).astype(o_ref.dtype)               # (TILE_B, 128)


def init_params(key, img_height, img_width):
    """torch.nn.Linear-style init, weights stored as (in_features, out_features)."""
    d_in = img_height * img_width * 3
    dims = [(d_in, 24), (24, 32), (32, 2)]
    keys = jax.random.split(key, 2 * len(dims))
    params = []
    for i, (fin, fout) in enumerate(dims):
        bound = 1.0 / jnp.sqrt(fin)
        w = jax.random.uniform(keys[2 * i], (fin, fout), jnp.float32, -bound, bound)
        b = jax.random.uniform(keys[2 * i + 1], (1, fout), jnp.float32, -bound, bound)
        params += [w, b]
    return tuple(params)


def prepare_params(params):
    """Zero-pad all feature dims to 128 lanes; cast weights to bf16 once.

    Zero padding is exact: padded weight columns/bias lanes are 0, so padded
    activation lanes stay 0 through ReLU and the first 2 output lanes are the
    true Q-values.
    """
    w1, b1, w2, b2, w3, b3 = params
    d_in_p = _round_up(w1.shape[0], LANE)
    w1p = _pad2d(w1, d_in_p, LANE).astype(jnp.bfloat16)   # (D_in_pad, 128)
    w2p = _pad2d(w2, LANE, LANE).astype(jnp.bfloat16)     # (128, 128)
    w3p = _pad2d(w3, LANE, LANE).astype(jnp.bfloat16)     # (128, 128)
    b1p = _pad2d(b1, 1, LANE)                             # (1, 128) f32
    b2p = _pad2d(b2, 1, LANE)
    b3p = _pad2d(b3, 1, LANE)
    return (w1p, b1p, w2p, b2p, w3p, b3p)


def dqn_forward(x_nchw, padded_params, *, n_out=2, tile_b=1024):
    """x_nchw: (B, 3, H, W), ideally bf16 (f32 also works but doubles the
    dominant HBM stream).  Returns (B, n_out) float32 Q-values."""
    w1, b1, w2, b2, w3, b3 = padded_params
    B = x_nchw.shape[0]
    d_in = x_nchw.shape[1] * x_nchw.shape[2] * x_nchw.shape[3]
    d_in_p = w1.shape[0]

    x_flat = x_nchw.reshape(B, -1)                        # flatten(start_dim=1), no copy
    if d_in_p != d_in:
        # Only needed when 3*H*W is not lane-aligned (not the 3x16x16 case).
        x_flat = jnp.pad(x_flat, ((0, 0), (0, d_in_p - d_in)))

    # Batch tile: large enough to amortize ~0.35us/step overhead, never larger
    # than the (sublane-rounded) batch, and capped so big batches produce >=2
    # grid steps (lets v7x's two TensorCores split the "parallel" axis).
    tile_b = min(tile_b, _round_up(B, SUBLANE))
    if B > 2 * SUBLANE:
        tile_b = min(tile_b, _round_up((B + 1) // 2, SUBLANE))
    num_tiles = pl.cdiv(B, tile_b)        # ragged last tile is sliced away below

    # Right-size the VMEM budget: double-buffered x + out tiles + resident
    # weights, plus headroom — not the whole 64 MiB of a v7x core.
    x_bytes = x_flat.dtype.itemsize
    w_bytes = sum(int(a.size) * a.dtype.itemsize for a in padded_params)
    vmem_needed = (2 * tile_b * d_in_p * x_bytes          # x tile, double-buffered
                   + 2 * tile_b * LANE * 2                # bf16 out tile, double-buffered
                   + 2 * w_bytes)                         # resident weights/biases
    vmem_limit = int(min(48 * 1024 * 1024,
                         max(16 * 1024 * 1024, vmem_needed + 8 * 1024 * 1024)))

    flops = 2 * num_tiles * tile_b * (d_in_p * LANE + 2 * LANE * LANE)
    bytes_accessed = int(x_flat.size) * x_bytes + w_bytes + B * LANE * 2

    out_padded = pl.pallas_call(
        dqn_kernel,
        out_shape=jax.ShapeDtypeStruct((B, LANE), jnp.bfloat16),
        grid=(num_tiles,),
        in_specs=[
            pl.BlockSpec((tile_b, d_in_p), lambda i: (i, 0)),   # x: tiled over B
            pl.BlockSpec(w1.shape, lambda i: (0, 0)),           # weights resident
            pl.BlockSpec(b1.shape, lambda i: (0, 0)),
            pl.BlockSpec(w2.shape, lambda i: (0, 0)),
            pl.BlockSpec(b2.shape, lambda i: (0, 0)),
            pl.BlockSpec(w3.shape, lambda i: (0, 0)),
            pl.BlockSpec(b3.shape, lambda i: (0, 0)),
        ],
        out_specs=pl.BlockSpec((tile_b, LANE), lambda i: (i, 0)),
        compiler_params=pltpu.CompilerParams(
            dimension_semantics=("parallel",),        # megacore split on v7x
            vmem_limit_bytes=vmem_limit,
        ),
        cost_estimate=pl.CostEstimate(
            flops=int(flops), transcendentals=0, bytes_accessed=int(bytes_accessed)),
    )(x_flat, w1, b1, w2, b2, w3, b3)

    return out_padded[:B, :n_out].astype(jnp.float32)


if __name__ == "__main__":
    img_height, img_width = 16, 16
    batch = 2

    key = jax.random.PRNGKey(0)
    k_x, k_p = jax.random.split(key)
    x_f32 = jax.random.normal(k_x, (batch, 3, img_height, img_width), jnp.float32)
    # Feed bf16 frames: x is ~85% of HBM bytes and the kernel uses bf16 MXU
    # inputs anyway, so storing x as bf16 halves the dominant DMA stream.
    x = x_f32.astype(jnp.bfloat16)
    params = init_params(k_p, img_height, img_width)
    padded = prepare_params(params)

    out = dqn_forward(x, padded)
    jax.block_until_ready(out)

    # pure-JAX f32 reference on the same (bf16-quantized) input; kernel uses
    # bf16 MXU inputs + bf16 output store with f32 accumulation, hence the
    # loose tolerance.
    w1, b1, w2, b2, w3, b3 = params
    xf = x.astype(jnp.float32).reshape(batch, -1)
    ref = jnp.maximum(xf @ w1 + b1, 0.0)
    ref = jnp.maximum(ref @ w2 + b2, 0.0)
    ref = ref @ w3 + b3

    assert out.shape == (batch, 2), out.shape
    assert jnp.allclose(out, ref, atol=5e-2, rtol=5e-2), (out, ref)

    print("KERNEL_OK")
</pallas_src>

<mosaic_0001>
module attributes {stable_mosaic.version = 11 : i64} {
  func.func @dqn_kernel(%arg0: i32, %arg1: memref<8x768xbf16, #tpu.memory_space<vmem>>, %arg2: memref<768x128xbf16, #tpu.memory_space<vmem>>, %arg3: memref<1x128xf32, #tpu.memory_space<vmem>>, %arg4: memref<128x128xbf16, #tpu.memory_space<vmem>>, %arg5: memref<1x128xf32, #tpu.memory_space<vmem>>, %arg6: memref<128x128xbf16, #tpu.memory_space<vmem>>, %arg7: memref<1x128xf32, #tpu.memory_space<vmem>>, %arg8: memref<8x128xbf16, #tpu.memory_space<vmem>>) attributes {dimension_semantics = [#tpu.dimension_semantics<parallel>], iteration_bounds = array<i64: 1>, scalar_prefetch = 0 : i64, scratch_operands = 0 : i64, tpu.core_type = #tpu.core_type<tc>, window_params = [{transform_indices = @transform_0, window_bounds = array<i64: 8, 768>}, {pipeline_mode = #tpu.pipeline_mode<synchronous>, transform_indices = @transform_1, window_bounds = array<i64: 768, 128>}, {pipeline_mode = #tpu.pipeline_mode<synchronous>, transform_indices = @transform_2, window_bounds = array<i64: 1, 128>}, {pipeline_mode = #tpu.pipeline_mode<synchronous>, transform_indices = @transform_3, window_bounds = array<i64: 128, 128>}, {pipeline_mode = #tpu.pipeline_mode<synchronous>, transform_indices = @transform_4, window_bounds = array<i64: 1, 128>}, {pipeline_mode = #tpu.pipeline_mode<synchronous>, transform_indices = @transform_5, window_bounds = array<i64: 128, 128>}, {pipeline_mode = #tpu.pipeline_mode<synchronous>, transform_indices = @transform_6, window_bounds = array<i64: 1, 128>}, {transform_indices = @transform_7, window_bounds = array<i64: 8, 128>}]} {
    %c0 = arith.constant 0 : index
    %c0_0 = arith.constant 0 : index
    %0 = vector.load %arg1[%c0, %c0_0] : memref<8x768xbf16, #tpu.memory_space<vmem>>, vector<8x768xbf16>
    %c0_1 = arith.constant 0 : index
    %c0_2 = arith.constant 0 : index
    %1 = vector.load %arg2[%c0_1, %c0_2] : memref<768x128xbf16, #tpu.memory_space<vmem>>, vector<768x128xbf16>
    %cst = arith.constant dense<0.000000e+00> : vector<8x128xf32>
    %2 = tpu.matmul %0, %1, %cst {dimension_numbers = #tpu.dot_dimension_numbers<[1], [0], [0], [1], [0, 0, 1, 1], [], []>} : vector<8x768xbf16>, vector<768x128xbf16>, vector<8x128xf32> -> vector<8x128xf32>
    %c0_3 = arith.constant 0 : index
    %c0_4 = arith.constant 0 : index
    %3 = vector.load %arg3[%c0_3, %c0_4] : memref<1x128xf32, #tpu.memory_space<vmem>>, vector<1x128xf32>
    %4 = vector.broadcast %3 : vector<1x128xf32> to vector<8x128xf32>
    %5 = arith.addf %2, %4 : vector<8x128xf32>
    %cst_5 = arith.constant 0.000000e+00 : f32
    %6 = vector.broadcast %cst_5 : f32 to vector<8x128xf32>
    %7 = arith.maximumf %5, %6 : vector<8x128xf32>
    %8 = arith.truncf %7 : vector<8x128xf32> to vector<8x128xbf16>
    %c0_6 = arith.constant 0 : index
    %c0_7 = arith.constant 0 : index
    %9 = vector.load %arg4[%c0_6, %c0_7] : memref<128x128xbf16, #tpu.memory_space<vmem>>, vector<128x128xbf16>
    %cst_8 = arith.constant dense<0.000000e+00> : vector<8x128xf32>
    %10 = tpu.matmul %8, %9, %cst_8 {dimension_numbers = #tpu.dot_dimension_numbers<[1], [0], [0], [1], [0, 0, 1, 1], [], []>} : vector<8x128xbf16>, vector<128x128xbf16>, vector<8x128xf32> -> vector<8x128xf32>
    %c0_9 = arith.constant 0 : index
    %c0_10 = arith.constant 0 : index
    %11 = vector.load %arg5[%c0_9, %c0_10] : memref<1x128xf32, #tpu.memory_space<vmem>>, vector<1x128xf32>
    %12 = vector.broadcast %11 : vector<1x128xf32> to vector<8x128xf32>
    %13 = arith.addf %10, %12 : vector<8x128xf32>
    %cst_11 = arith.constant 0.000000e+00 : f32
    %14 = vector.broadcast %cst_11 : f32 to vector<8x128xf32>
    %15 = arith.maximumf %13, %14 : vector<8x128xf32>
    %16 = arith.truncf %15 : vector<8x128xf32> to vector<8x128xbf16>
    %c0_12 = arith.constant 0 : index
    %c0_13 = arith.constant 0 : index
    %17 = vector.load %arg6[%c0_12, %c0_13] : memref<128x128xbf16, #tpu.memory_space<vmem>>, vector<128x128xbf16>
    %cst_14 = arith.constant dense<0.000000e+00> : vector<8x128xf32>
    %18 = tpu.matmul %16, %17, %cst_14 {dimension_numbers = #tpu.dot_dimension_numbers<[1], [0], [0], [1], [0, 0, 1, 1], [], []>} : vector<8x128xbf16>, vector<128x128xbf16>, vector<8x128xf32> -> vector<8x128xf32>
    %c0_15 = arith.constant 0 : index
    %c0_16 = arith.constant 0 : index
    %19 = vector.load %arg7[%c0_15, %c0_16] : memref<1x128xf32, #tpu.memory_space<vmem>>, vector<1x128xf32>
    %20 = vector.broadcast %19 : vector<1x128xf32> to vector<8x128xf32>
    %21 = arith.addf %18, %20 : vector<8x128xf32>
    %22 = arith.truncf %21 : vector<8x128xf32> to vector<8x128xbf16>
    %c0_17 = arith.constant 0 : index
    %c0_18 = arith.constant 0 : index
    %23 = vector.load %arg8[%c0_17, %c0_18] : memref<8x128xbf16, #tpu.memory_space<vmem>>, vector<8x128xbf16>
    tpu.vector_store %arg8[%c0_17, %c0_18], %22 {strides = array<i32>} : memref<8x128xbf16, #tpu.memory_space<vmem>>, vector<8x128xbf16>,
    return
  }
  func.func @transform_0(%arg0: i32) -> (i32, i32) {
    %c0_i32 = arith.constant 0 : i32
    %c0_i32_0 = arith.constant 0 : i32
    return %arg0, %c0_i32 : i32, i32
  }
  func.func @transform_1(%arg0: i32) -> (i32, i32) {
    %c0_i32 = arith.constant 0 : i32
    %c0_i32_0 = arith.constant 0 : i32
    %c0_i32_1 = arith.constant 0 : i32
    return %c0_i32, %c0_i32_0 : i32, i32
  }
  func.func @transform_2(%arg0: i32) -> (i32, i32) {
    %c0_i32 = arith.constant 0 : i32
    %c0_i32_0 = arith.constant 0 : i32
    %c0_i32_1 = arith.constant 0 : i32
    return %c0_i32, %c0_i32_0 : i32, i32
  }
  func.func @transform_3(%arg0: i32) -> (i32, i32) {
    %c0_i32 = arith.constant 0 : i32
    %c0_i32_0 = arith.constant 0 : i32
    %c0_i32_1 = arith.constant 0 : i32
    return %c0_i32, %c0_i32_0 : i32, i32
  }
  func.func @transform_4(%arg0: i32) -> (i32, i32) {
    %c0_i32 = arith.constant 0 : i32
    %c0_i32_0 = arith.constant 0 : i32
    %c0_i32_1 = arith.constant 0 : i32
    return %c0_i32, %c0_i32_0 : i32, i32
  }
  func.func @transform_5(%arg0: i32) -> (i32, i32) {
    %c0_i32 = arith.constant 0 : i32
    %c0_i32_0 = arith.constant 0 : i32
    %c0_i32_1 = arith.constant 0 : i32
    return %c0_i32, %c0_i32_0 : i32, i32
  }
  func.func @transform_6(%arg0: i32) -> (i32, i32) {
    %c0_i32 = arith.constant 0 : i32
    %c0_i32_0 = arith.constant 0 : i32
    %c0_i32_1 = arith.constant 0 : i32
    return %c0_i32, %c0_i32_0 : i32, i32
  }
  func.func @transform_7(%arg0: i32) -> (i32, i32) {
    %c0_i32 = arith.constant 0 : i32
    %c0_i32_0 = arith.constant 0 : i32
    return %arg0, %c0_i32 : i32, i32
  }
}

</mosaic_0001>

<llo_original>
// kernel: tpu_custom_call.1
$region0: #{tpu_custom_call.1}
  #allocation0 [shape = 'u32[]', space=smem, size = 0x4, offset = 0x4, fixed_abs, tag = 'smem constant byte address 0x4 - core index']
  #allocation1 [shape = 'u32[144,128]{1,0:T(1,128)}', space=vmem, size = 0x12000, scoped, tag = 'internal scratch']
  %s0 = inlined_call_operand.hbm [shape: bf16[2,768], index: 0, kind: input, shape index: {}]
  %s1 = inlined_call_operand.hbm [shape: bf16[768,128], index: 1, kind: input, shape index: {}]
  %s2 = inlined_call_operand.vmem [shape: f32[1,128], index: 2, kind: input, shape index: {}]
  %s3 = inlined_call_operand.hbm [shape: bf16[128,128], index: 3, kind: input, shape index: {}]
  %s4 = inlined_call_operand.vmem [shape: f32[1,128], index: 4, kind: input, shape index: {}]
  %s5 = inlined_call_operand.hbm [shape: bf16[128,128], index: 5, kind: input, shape index: {}]
  %s6 = inlined_call_operand.vmem [shape: f32[1,128], index: 6, kind: input, shape index: {}]
  %s7 = inlined_call_operand.hbm [shape: bf16[2,128], index: 7, kind: output, shape index: {}]
  %s8 = sld [smem:[#allocation0]]
  $region54: #{tpu_custom_call.1} parent=0
    _
  %s10 = ssub.s32 1, %s8
  %s11 = scalar_select 0, %s10, %s8
  $region1: #{tpu_custom_call.1} parent=0
    #allocation2 [shape = 'u8[12288]{0}', space=vmem, size = 0x3000, scoped, tag = 'input window, operand 0, single buffered']
    #allocation3 [shape = 's32[1]{0}', space=sflag, size = 0x4, scoped, tag = 'scoped memory for tpu_custom_call.1']
    #allocation4 [shape = 's32[1]{0}', space=sflag, size = 0x4, scoped, tag = 'scoped memory for tpu_custom_call.1']
    #allocation5 [shape = 'u8[196608]{0}', space=vmem, size = 0x30000, scoped, tag = 'input window, operand 1, single buffered']
    #allocation6 [shape = 's32[1]{0}', space=sflag, size = 0x4, scoped, tag = 'scoped memory for tpu_custom_call.1']
    #allocation7 [shape = 'u8[32768]{0}', space=vmem, size = 0x8000, scoped, tag = 'input window, operand 3, single buffered']
    #allocation8 [shape = 'u8[32768]{0}', space=vmem, size = 0x8000, scoped, tag = 'input window, operand 5, single buffered']
    #allocation9 [shape = 's32[1]{0}', space=sflag, size = 0x4, scoped, tag = 'scoped memory for tpu_custom_call.1']
    #allocation10 [shape = 'u8[2048]{0}', space=vmem, size = 0x800, scoped, tag = 'output window, operand 0, single buffered']
    %12 = vsyncpa [#allocation3], 0
    %13 = vsyncpa [#allocation6], 0
    %14 = vsyncpa [#allocation9], 0
    %15 = vsyncpa [#allocation4], 0
    // Predicated region
    $region2: #{tpu_custom_call.1} parent=1 // pred_check
      _
    $region3: #{tpu_custom_call.1} parent=1 // pred_check_branch
      %17 = sbr.rel (0) target = $region5
    $region4: #{tpu_custom_call.1} parent=1 // pred_region
      %s19 = ssub.s32 384, 96
      %20 = vsyncadd [#allocation3], %s19
      %s21 = sshll.u32 [#allocation2], 4
      %s22 = int_to_ptr.vmem [resolvable:$true] %s21
      %27 = dma.hbm_to_vmem [thread:$0]  %s0, 96, %s22, [#allocation3], 96, 96, 6
    $region5: #{tpu_custom_call.1} parent=1 // pred_fallthru
      _
    // Predicated region
    $region6: #{tpu_custom_call.1} parent=1 // pred_check
      _
    $region7: #{tpu_custom_call.1} parent=1 // pred_check_branch
      %29 = sbr.rel (0) target = $region9
    $region8: #{tpu_custom_call.1} parent=1 // pred_region
      %s31 = ssub.s32 6144, 6144
      %32 = vsyncadd [#allocation6], %s31
      %s33 = sshll.u32 [#allocation5], 4
      %s34 = int_to_ptr.vmem [resolvable:$true] %s33
      %39 = dma.hbm_to_vmem [thread:$0]  %s1, 6144, %s34, [#allocation6], 64, 64, 4
    $region9: #{tpu_custom_call.1} parent=1 // pred_fallthru
      _
    // Predicated region
    $region10: #{tpu_custom_call.1} parent=1 // pred_check
      _
    $region11: #{tpu_custom_call.1} parent=1 // pred_check_branch
      %41 = sbr.rel (0) target = $region13
    $region12: #{tpu_custom_call.1} parent=1 // pred_region
      _
    $region13: #{tpu_custom_call.1} parent=1 // pred_fallthru
      _
    // Predicated region
    $region14: #{tpu_custom_call.1} parent=1 // pred_check
      _
    $region15: #{tpu_custom_call.1} parent=1 // pred_check_branch
      %43 = sbr.rel (0) target = $region17
    $region16: #{tpu_custom_call.1} parent=1 // pred_region
      %s45 = ssub.s32 1024, 1024
      %46 = vsyncadd [#allocation6], %s45
      %s47 = sshll.u32 [#allocation7], 4
      %s48 = int_to_ptr.vmem [resolvable:$true] %s47
      %53 = dma.hbm_to_vmem [thread:$0]  %s3, 1024, %s48, [#allocation6], 64, 64, 4
    $region17: #{tpu_custom_call.1} parent=1 // pred_fallthru
      _
    // Predicated region
    $region18: #{tpu_custom_call.1} parent=1 // pred_check
      _
    $region19: #{tpu_custom_call.1} parent=1 // pred_check_branch
      %55 = sbr.rel (0) target = $region21
    $region20: #{tpu_custom_call.1} parent=1 // pred_region
      _
    $region21: #{tpu_custom_call.1} parent=1 // pred_fallthru
      _
    // Predicated region
    $region22: #{tpu_custom_call.1} parent=1 // pred_check
      _
    $region23: #{tpu_custom_call.1} parent=1 // pred_check_branch
      %57 = sbr.rel (0) target = $region25
    $region24: #{tpu_custom_call.1} parent=1 // pred_region
      %s59 = ssub.s32 1024, 1024
      %60 = vsyncadd [#allocation9], %s59
      %s61 = sshll.u32 [#allocation8], 4
      %s62 = int_to_ptr.vmem [resolvable:$true] %s61
      %67 = dma.hbm_to_vmem [thread:$0]  %s5, 1024, %s62, [#allocation9], 64, 64, 4
    $region25: #{tpu_custom_call.1} parent=1 // pred_fallthru
      _
    // Predicated region
    $region26: #{tpu_custom_call.1} parent=1 // pred_check
      _
    $region27: #{tpu_custom_call.1} parent=1 // pred_check_branch
      %69 = sbr.rel (0) target = $region29
    $region28: #{tpu_custom_call.1} parent=1 // pred_region
      _
    $region29: #{tpu_custom_call.1} parent=1 // pred_fallthru
      _
    // Predicated region
    $region30: #{tpu_custom_call.1} parent=1 // pred_check
      _
    $region31: #{tpu_custom_call.1} parent=1 // pred_check_branch
      %71 = sbr.rel (0) target = $region33
    $region32: #{tpu_custom_call.1} parent=1 // pred_region
      %72 = dma.done [#allocation3], 384
    $region33: #{tpu_custom_call.1} parent=1 // pred_fallthru
      _
    // Predicated region
    $region34: #{tpu_custom_call.1} parent=1 // pred_check
      _
    $region35: #{tpu_custom_call.1} parent=1 // pred_check_branch
      %74 = sbr.rel (0) target = $region37
    $region36: #{tpu_custom_call.1} parent=1 // pred_region
      %75 = dma.done [#allocation6], 6144
    $region37: #{tpu_custom_call.1} parent=1 // pred_fallthru
      _
    // Predicated region
    $region38: #{tpu_custom_call.1} parent=1 // pred_check
      _
    $region39: #{tpu_custom_call.1} parent=1 // pred_check_branch
      %77 = sbr.rel (0) target = $region41
    $region40: #{tpu_custom_call.1} parent=1 // pred_region
      %78 = dma.done [#allocation6], 1024
    $region41: #{tpu_custom_call.1} parent=1 // pred_fallthru
      _
    // Predicated region
    $region42: #{tpu_custom_call.1} parent=1 // pred_check
      _
    $region43: #{tpu_custom_call.1} parent=1 // pred_check_branch
      %80 = sbr.rel (0) target = $region45
    $region44: #{tpu_custom_call.1} parent=1 // pred_region
      %81 = dma.done [#allocation9], 1024
    $region45: #{tpu_custom_call.1} parent=1 // pred_fallthru
      _
    %v83 = vld [vmem:[#allocation2] sm:$0x3f]
    %v84 = vld [vmem:[#allocation2 + $0x6] sm:$0x3f]
    %v85 = vld [vmem:[#allocation2 + $0xc] sm:$0x3f]
    %v86 = vld [vmem:[#allocation2 + $0x12] sm:$0x3f]
    %v87 = vld [vmem:[#allocation5] sm:$0xf]
    %v88 = vld [vmem:[#allocation5 + $0x4] sm:$0xf]
    %v89 = vld [vmem:[#allocation5 + $0x8] sm:$0xf]
    %v90 = vld [vmem:[#allocation5 + $0xc] sm:$0xf]
    %v91 = vld [vmem:[#allocation5 + $0x10] sm:$0xf]
    %v92 = vld [vmem:[#allocation5 + $0x14] sm:$0xf]
    %v93 = vld [vmem:[#allocation5 + $0x18] sm:$0xf]
    %v94 = vld [vmem:[#allocation5 + $0x1c] sm:$0xf]
    %v95 = vld [vmem:[#allocation5 + $0x20] sm:$0xf]
    %v96 = vld [vmem:[#allocation5 + $0x24] sm:$0xf]
    %v97 = vld [vmem:[#allocation5 + $0x28] sm:$0xf]
    %v98 = vld [vmem:[#allocation5 + $0x2c] sm:$0xf]
    %v99 = vld [vmem:[#allocation5 + $0x30] sm:$0xf]
    %v100 = vld [vmem:[#allocation5 + $0x34] sm:$0xf]
    %v101 = vld [vmem:[#allocation5 + $0x38] sm:$0xf]
    %v102 = vld [vmem:[#allocation5 + $0x3c] sm:$0xf]
    %v103 = vld [vmem:[#allocation5 + $0x40] sm:$0xf]
    %v104 = vld [vmem:[#allocation5 + $0x44] sm:$0xf]
    %v105 = vld [vmem:[#allocation5 + $0x48] sm:$0xf]
    %v106 = vld [vmem:[#allocation5 + $0x4c] sm:$0xf]
    %v107 = vld [vmem:[#allocation5 + $0x50] sm:$0xf]
    %v108 = vld [vmem:[#allocation5 + $0x54] sm:$0xf]
    %v109 = vld [vmem:[#allocation5 + $0x58] sm:$0xf]
    %v110 = vld [vmem:[#allocation5 + $0x5c] sm:$0xf]
    %v111 = vld [vmem:[#allocation5 + $0x60] sm:$0xf]
    %v112 = vld [vmem:[#allocation5 + $0x64] sm:$0xf]
    %v113 = vld [vmem:[#allocation5 + $0x68] sm:$0xf]
    %v114 = vld [vmem:[#allocation5 + $0x6c] sm:$0xf]
    %v115 = vld [vmem:[#allocation5 + $0x70] sm:$0xf]
    %v116 = vld [vmem:[#allocation5 + $0x74] sm:$0xf]
    %v117 = vld [vmem:[#allocation5 + $0x78] sm:$0xf]
    %v118 = vld [vmem:[#allocation5 + $0x7c] sm:$0xf]
    %v119 = vld [vmem:[#allocation5 + $0x80] sm:$0xf]
    %v120 = vld [vmem:[#allocation5 + $0x84] sm:$0xf]
    %v121 = vld [vmem:[#allocation5 + $0x88] sm:$0xf]
    %v122 = vld [vmem:[#allocation5 + $0x8c] sm:$0xf]
    %v123 = vld [vmem:[#allocation5 + $0x90] sm:$0xf]
    %v124 = vld [vmem:[#allocation5 + $0x94] sm:$0xf]
    %v125 = vld [vmem:[#allocation5 + $0x98] sm:$0xf]
    %v126 = vld [vmem:[#allocation5 + $0x9c] sm:$0xf]
    %v127 = vld [vmem:[#allocation5 + $0xa0] sm:$0xf]
    %v128 = vld [vmem:[#allocation5 + $0xa4] sm:$0xf]
    %v129 = vld [vmem:[#allocation5 + $0xa8] sm:$0xf]
    %v130 = vld [vmem:[#allocation5 + $0xac] sm:$0xf]
    %v131 = vld [vmem:[#allocation5 + $0xb0] sm:$0xf]
    %v132 = vld [vmem:[#allocation5 + $0xb4] sm:$0xf]
    %v133 = vld [vmem:[#allocation5 + $0xb8] sm:$0xf]
    %v134 = vld [vmem:[#allocation5 + $0xbc] sm:$0xf]
    %v135 = vld [vmem:[#allocation5 + $0xc0] sm:$0xf]
    %v136 = vld [vmem:[#allocation5 + $0xc4] sm:$0xf]
    %v137 = vld [vmem:[#allocation5 + $0xc8] sm:$0xf]
    %v138 = vld [vmem:[#allocation5 + $0xcc] sm:$0xf]
    %v139 = vld [vmem:[#allocation5 + $0xd0] sm:$0xf]
    %v140 = vld [vmem:[#allocation5 + $0xd4] sm:$0xf]
    %v141 = vld [vmem:[#allocation5 + $0xd8] sm:$0xf]
    %v142 = vld [vmem:[#allocation5 + $0xdc] sm:$0xf]
    %v143 = vld [vmem:[#allocation5 + $0xe0] sm:$0xf]
    %v144 = vld [vmem:[#allocation5 + $0xe4] sm:$0xf]
    %v145 = vld [vmem:[#allocation5 + $0xe8] sm:$0xf]
    %v146 = vld [vmem:[#allocation5 + $0xec] sm:$0xf]
    %v147 = vld [vmem:[#allocation5 + $0xf0] sm:$0xf]
    %v148 = vld [vmem:[#allocation5 + $0xf4] sm:$0xf]
    %v149 = vld [vmem:[#allocation5 + $0xf8] sm:$0xf]
    %v150 = vld [vmem:[#allocation5 + $0xfc] sm:$0xf]
    %v151 = vld [vmem:[#allocation5 + $0x100] sm:$0xf]
    %v152 = vld [vmem:[#allocation5 + $0x104] sm:$0xf]
    %v153 = vld [vmem:[#allocation5 + $0x108] sm:$0xf]
    %v154 = vld [vmem:[#allocation5 + $0x10c] sm:$0xf]
    %v155 = vld [vmem:[#allocation5 + $0x110] sm:$0xf]
    %v156 = vld [vmem:[#allocation5 + $0x114] sm:$0xf]
    %v157 = vld [vmem:[#allocation5 + $0x118] sm:$0xf]
    %v158 = vld [vmem:[#allocation5 + $0x11c] sm:$0xf]
    %v159 = vld [vmem:[#allocation5 + $0x120] sm:$0xf]
    %v160 = vld [vmem:[#allocation5 + $0x124] sm:$0xf]
    %v161 = vld [vmem:[#allocation5 + $0x128] sm:$0xf]
    %v162 = vld [vmem:[#allocation5 + $0x12c] sm:$0xf]
    %v163 = vld [vmem:[#allocation5 + $0x130] sm:$0xf]
    %v164 = vld [vmem:[#allocation5 + $0x134] sm:$0xf]
    %v165 = vld [vmem:[#allocation5 + $0x138] sm:$0xf]
    %v166 = vld [vmem:[#allocation5 + $0x13c] sm:$0xf]
    %v167 = vld [vmem:[#allocation5 + $0x140] sm:$0xf]
    %v168 = vld [vmem:[#allocation5 + $0x144] sm:$0xf]
    %v169 = vld [vmem:[#allocation5 + $0x148] sm:$0xf]
    %v170 = vld [vmem:[#allocation5 + $0x14c] sm:$0xf]
    %v171 = vld [vmem:[#allocation5 + $0x150] sm:$0xf]
    %v172 = vld [vmem:[#allocation5 + $0x154] sm:$0xf]
    %v173 = vld [vmem:[#allocation5 + $0x158] sm:$0xf]
    %v174 = vld [vmem:[#allocation5 + $0x15c] sm:$0xf]
    %v175 = vld [vmem:[#allocation5 + $0x160] sm:$0xf]
    %v176 = vld [vmem:[#allocation5 + $0x164] sm:$0xf]
    %v177 = vld [vmem:[#allocation5 + $0x168] sm:$0xf]
    %v178 = vld [vmem:[#allocation5 + $0x16c] sm:$0xf]
    %v179 = vld [vmem:[#allocation5 + $0x170] sm:$0xf]
    %v180 = vld [vmem:[#allocation5 + $0x174] sm:$0xf]
    %v181 = vld [vmem:[#allocation5 + $0x178] sm:$0xf]
    %v182 = vld [vmem:[#allocation5 + $0x17c] sm:$0xf]
    %v183 = vld [vmem:[%s2] sm:$0x1]
    %v185 = vlaneseq
    %v186 = vshrl.u32 %v185, 7
    %v187 = vsub.s32 0, %v186
    %v188 = vrot.slane %v183, %v187
    %v194 = vcombine.low %v83, %v84
    %v195 = vcombine.high %v83, %v84
    %v196 = vcombine.low %v85, %v86
    %v197 = vcombine.high %v85, %v86
    %v199 = vunpack.c.l.s4 1966171168
    %v200 = vunpack.c.0.s8 %v199
    %v201 = vlaneseq
    %v202 = vshrl.u32 %v201, 7
    %v203 = vsub.s32 %v200, %v202
    %v204 = vrot.slane %v194, %v203
    %v206 = vunpack.c.l.s4 1966171168
    %v207 = vunpack.c.0.s8 %v206
    %v208 = vlaneseq
    %v209 = vshrl.u32 %v208, 7
    %v210 = vsub.s32 %v207, %v209
    %v211 = vrot.slane %v195, %v210
    %v213 = vunpack.c.l.s4 1966171168
    %v214 = vunpack.c.0.s8 %v213
    %v215 = vlaneseq
    %v216 = vshrl.u32 %v215, 7
    %v217 = vsub.s32 %v214, %v216
    %v218 = vrot.slane %v196, %v217
    %v220 = vunpack.c.l.s4 1966171168
    %v221 = vunpack.c.0.s8 %v220
    %v222 = vlaneseq
    %v223 = vshrl.u32 %v222, 7
    %v224 = vsub.s32 %v221, %v223
    %v225 = vrot.slane %v197, %v224
    %v226 = vcombine.low %v204, %v218
    %v227 = vcombine.high %v204, %v218
    %v228 = vcombine.low %v211, %v225
    %v229 = vcombine.high %v211, %v225
    %v231 = vunpack.c.l.s4 1966171168
    %v232 = vunpack.c.0.s8 %v231
    %v233 = vlaneseq
    %v234 = vshrl.u32 %v233, 7
    %v235 = vsub.s32 %v232, %v234
    %v236 = vrot.slane %v226, %v235
    %v238 = vunpack.c.l.s4 1966171168
    %v239 = vunpack.c.0.s8 %v238
    %v240 = vlaneseq
    %v241 = vshrl.u32 %v240, 7
    %v242 = vsub.s32 %v239, %v241
    %v243 = vrot.slane %v228, %v242
    %v245 = vunpack.c.l.s4 1966171168
    %v246 = vunpack.c.0.s8 %v245
    %v247 = vlaneseq
    %v248 = vshrl.u32 %v247, 7
    %v249 = vsub.s32 %v246, %v248
    %v250 = vrot.slane %v227, %v249
    %v252 = vunpack.c.l.s4 1966171168
    %v253 = vunpack.c.0.s8 %v252
    %v254 = vlaneseq
    %v255 = vshrl.u32 %v254, 7
    %v256 = vsub.s32 %v253, %v255
    %v257 = vrot.slane %v229, %v256
    %v258 = vcombine.high %v236, %v236
    %v259 = vcombine.high %v250, %v250
    %v362 = vunpack.c.l.b16 %v87
    %v363 = vunpack.c.l.b16 %v88
    %v364 = vunpack.c.l.b16 %v89
    %v365 = vunpack.c.l.b16 %v90
    %v366 = vunpack.c.l.b16 %v91
    %v367 = vunpack.c.l.b16 %v92
    %v368 = vunpack.c.l.b16 %v93
    %v369 = vunpack.c.l.b16 %v94
    %v370 = vunpack.c.l.b16 %v95
    %v371 = vunpack.c.l.b16 %v96
    %v372 = vunpack.c.l.b16 %v97
    %v373 = vunpack.c.l.b16 %v98
    %v374 = vunpack.c.l.b16 %v99
    %v375 = vunpack.c.l.b16 %v100
    %v376 = vunpack.c.l.b16 %v101
    %v377 = vunpack.c.l.b16 %v102
    %v378 = vunpack.c.l.b16 %v103
    %v379 = vunpack.c.l.b16 %v104
    %v380 = vunpack.c.l.b16 %v105
    %v381 = vunpack.c.l.b16 %v106
    %v382 = vunpack.c.l.b16 %v107
    %v383 = vunpack.c.l.b16 %v108
    %v384 = vunpack.c.l.b16 %v109
    %v385 = vunpack.c.l.b16 %v110
    %v386 = vunpack.c.l.b16 %v111
    %v387 = vunpack.c.l.b16 %v112
    %v388 = vunpack.c.l.b16 %v113
    %v389 = vunpack.c.l.b16 %v114
    %v390 = vunpack.c.l.b16 %v115
    %v391 = vunpack.c.l.b16 %v116
    %v392 = vunpack.c.l.b16 %v117
    %v393 = vunpack.c.l.b16 %v118
    %v394 = vunpack.c.l.b16 %v119
    %v395 = vunpack.c.l.b16 %v120
    %v396 = vunpack.c.l.b16 %v121
    %v397 = vunpack.c.l.b16 %v122
    %v398 = vunpack.c.l.b16 %v123
    %v399 = vunpack.c.l.b16 %v124
    %v400 = vunpack.c.l.b16 %v125
    %v401 = vunpack.c.l.b16 %v126
    %v402 = vunpack.c.l.b16 %v127
    %v403 = vunpack.c.l.b16 %v128
    %v404 = vunpack.c.l.b16 %v129
    %v405 = vunpack.c.l.b16 %v130
    %v406 = vunpack.c.l.b16 %v131
    %v407 = vunpack.c.l.b16 %v132
    %v408 = vunpack.c.l.b16 %v133
    %v409 = vunpack.c.l.b16 %v134
    %v410 = vunpack.c.l.b16 %v135
    %v411 = vunpack.c.l.b16 %v136
    %v412 = vunpack.c.l.b16 %v137
    %v413 = vunpack.c.l.b16 %v138
    %v414 = vunpack.c.l.b16 %v139
    %v415 = vunpack.c.l.b16 %v140
    %v416 = vunpack.c.l.b16 %v141
    %v417 = vunpack.c.l.b16 %v142
    %v418 = vunpack.c.l.b16 %v143
    %v419 = vunpack.c.l.b16 %v144
    %v420 = vunpack.c.l.b16 %v145
    %v421 = vunpack.c.l.b16 %v146
    %v422 = vunpack.c.l.b16 %v147
    %v423 = vunpack.c.l.b16 %v148
    %v424 = vunpack.c.l.b16 %v149
    %v425 = vunpack.c.l.b16 %v150
    %v426 = vunpack.c.l.b16 %v151
    %v427 = vunpack.c.l.b16 %v152
    %v428 = vunpack.c.l.b16 %v153
    %v429 = vunpack.c.l.b16 %v154
    %v430 = vunpack.c.l.b16 %v155
    %v431 = vunpack.c.l.b16 %v156
    %v432 = vunpack.c.l.b16 %v157
    %v433 = vunpack.c.l.b16 %v158
    %v434 = vunpack.c.l.b16 %v159
    %v435 = vunpack.c.l.b16 %v160
    %v436 = vunpack.c.l.b16 %v161
    %v437 = vunpack.c.l.b16 %v162
    %v438 = vunpack.c.l.b16 %v163
    %v439 = vunpack.c.l.b16 %v164
    %v440 = vunpack.c.l.b16 %v165
    %v441 = vunpack.c.l.b16 %v166
    %v442 = vunpack.c.l.b16 %v167
    %v443 = vunpack.c.l.b16 %v168
    %v444 = vunpack.c.l.b16 %v169
    %v445 = vunpack.c.l.b16 %v170
    %v446 = vunpack.c.l.b16 %v171
    %v447 = vunpack.c.l.b16 %v172
    %v448 = vunpack.c.l.b16 %v173
    %v449 = vunpack.c.l.b16 %v174
    %v450 = vunpack.c.l.b16 %v175
    %v451 = vunpack.c.l.b16 %v176
    %v452 = vunpack.c.l.b16 %v177
    %v453 = vunpack.c.l.b16 %v178
    %v454 = vunpack.c.l.b16 %v179
    %v455 = vunpack.c.l.b16 %v180
    %v456 = vunpack.c.l.b16 %v181
    %v457 = vunpack.c.l.b16 %v182
    %v458 = vpack.c.b16 %v363, %v362
    %v459 = vpack.c.b16 %v365, %v364
    %v460 = vpack.c.b16 %v367, %v366
    %v461 = vpack.c.b16 %v369, %v368
    %v462 = vpack.c.b16 %v371, %v370
    %v463 = vpack.c.b16 %v373, %v372
    %v464 = vpack.c.b16 %v375, %v374
    %v465 = vpack.c.b16 %v377, %v376
    %v466 = vpack.c.b16 %v379, %v378
    %v467 = vpack.c.b16 %v381, %v380
    %v468 = vpack.c.b16 %v383, %v382
    %v469 = vpack.c.b16 %v385, %v384
    %v470 = vpack.c.b16 %v387, %v386
    %v471 = vpack.c.b16 %v389, %v388
    %v472 = vpack.c.b16 %v391, %v390
    %v473 = vpack.c.b16 %v393, %v392
    %v474 = vpack.c.b16 %v395, %v394
    %v475 = vpack.c.b16 %v397, %v396
    %v476 = vpack.c.b16 %v399, %v398
    %v477 = vpack.c.b16 %v401, %v400
    %v478 = vpack.c.b16 %v403, %v402
    %v479 = vpack.c.b16 %v405, %v404
    %v480 = vpack.c.b16 %v407, %v406
    %v481 = vpack.c.b16 %v409, %v408
    %v482 = vpack.c.b16 %v411, %v410
    %v483 = vpack.c.b16 %v413, %v412
    %v484 = vpack.c.b16 %v415, %v414
    %v485 = vpack.c.b16 %v417, %v416
    %v486 = vpack.c.b16 %v419, %v418
    %v487 = vpack.c.b16 %v421, %v420
    %v488 = vpack.c.b16 %v423, %v422
    %v489 = vpack.c.b16 %v425, %v424
    %v490 = vpack.c.b16 %v427, %v426
    %v491 = vpack.c.b16 %v429, %v428
    %v492 = vpack.c.b16 %v431, %v430
    %v493 = vpack.c.b16 %v433, %v432
    %v494 = vpack.c.b16 %v435, %v434
    %v495 = vpack.c.b16 %v437, %v436
    %v496 = vpack.c.b16 %v439, %v438
    %v497 = vpack.c.b16 %v441, %v440
    %v498 = vpack.c.b16 %v443, %v442
    %v499 = vpack.c.b16 %v445, %v444
    %v500 = vpack.c.b16 %v447, %v446
    %v501 = vpack.c.b16 %v449, %v448
    %v502 = vpack.c.b16 %v451, %v450
    %v503 = vpack.c.b16 %v453, %v452
    %v504 = vpack.c.b16 %v455, %v454
    %v505 = vpack.c.b16 %v457, %v456
    %554 = vmatprep.subr.bf16.mxu0 0
    %555 = vmatpush1.bf16.msra.mxu0 %v465
    %556 = vmatprep.subr.bf16.mxu0 0
    %557 = vmatpush1.bf16.msra.mxu0 %v464
    %558 = vmatprep.subr.bf16.mxu0 0
    %559 = vmatpush1.bf16.msra.mxu0 %v463
    %560 = vmatprep.subr.bf16.mxu0 0
    %561 = vmatpush1.bf16.msra.mxu0 %v462
    %562 = vmatprep.subr.bf16.mxu0 0
    %563 = vmatpush1.bf16.msra.mxu0 %v461
    %564 = vmatprep.subr.bf16.mxu0 0
    %565 = vmatpush1.bf16.msra.mxu0 %v460
    %566 = vmatprep.subr.bf16.mxu0 0
    %567 = vmatpush1.bf16.msra.mxu0 %v459
    %568 = vmatprep.subr.bf16.mxu0 0
    %569 = vmatpush1.bf16.msra.mxu0 %v458
    %570 = vmatprep.subr.bf16.mxu0 0
    %571 = vmatpush2.bf16.msra.mxu0 %v473
    %572 = vmatprep.subr.bf16.mxu0 0
    %573 = vmatpush2.bf16.msra.mxu0 %v472
    %574 = vmatprep.subr.bf16.mxu0 0
    %575 = vmatpush2.bf16.msra.mxu0 %v471
    %576 = vmatprep.subr.bf16.mxu0 0
    %577 = vmatpush2.bf16.msra.mxu0 %v470
    %578 = vmatprep.subr.bf16.mxu0 0
    %579 = vmatpush2.bf16.msra.mxu0 %v469
    %580 = vmatprep.subr.bf16.mxu0 0
    %581 = vmatpush2.bf16.msra.mxu0 %v468
    %582 = vmatprep.subr.bf16.mxu0 0
    %583 = vmatpush2.bf16.msra.mxu0 %v467
    %584 = vmatprep.subr.bf16.mxu0 0
    %585 = vmatpush2.bf16.msra.mxu0 %v466
    %586 = vmatprep.mubr.bf16.mxu0 %v250
    %587 = vmatmul.mubr.bf16.gmra.mxu0 %v236
    %v588 = vpop.f32.mrf.mxu0
    %v589 = vadd.f32 %v188, %v588
    %v590 = vpop.f32.mrf.mxu0
    %v591 = vpop.f32.mrf.mxu0
    %v592 = vpop.f32.mrf.mxu0
    %593 = vdwg.mxu0
    %594 = vmatprep.subr.bf16.mxu0 0
    %595 = vmatpush1.bf16.msra.mxu0 %v481
    %596 = vmatprep.subr.bf16.mxu0 0
    %597 = vmatpush1.bf16.msra.mxu0 %v480
    %598 = vmatprep.subr.bf16.mxu0 0
    %599 = vmatpush1.bf16.msra.mxu0 %v479
    %600 = vmatprep.subr.bf16.mxu0 0
    %601 = vmatpush1.bf16.msra.mxu0 %v478
    %602 = vmatprep.subr.bf16.mxu0 0
    %603 = vmatpush1.bf16.msra.mxu0 %v477
    %604 = vmatprep.subr.bf16.mxu0 0
    %605 = vmatpush1.bf16.msra.mxu0 %v476
    %606 = vmatprep.subr.bf16.mxu0 0
    %607 = vmatpush1.bf16.msra.mxu0 %v475
    %608 = vmatprep.subr.bf16.mxu0 0
    %609 = vmatpush1.bf16.msra.mxu0 %v474
    %610 = vmatprep.subr.bf16.mxu0 0
    %611 = vmatpush2.bf16.msra.mxu0 %v489
    %612 = vmatprep.subr.bf16.mxu0 0
    %613 = vmatpush2.bf16.msra.mxu0 %v488
    %614 = vmatprep.subr.bf16.mxu0 0
    %615 = vmatpush2.bf16.msra.mxu0 %v487
    %616 = vmatprep.subr.bf16.mxu0 0
    %617 = vmatpush2.bf16.msra.mxu0 %v486
    %618 = vmatprep.subr.bf16.mxu0 0
    %619 = vmatpush2.bf16.msra.mxu0 %v485
    %620 = vmatprep.subr.bf16.mxu0 0
    %621 = vmatpush2.bf16.msra.mxu0 %v484
    %622 = vmatprep.subr.bf16.mxu0 0
    %623 = vmatpush2.bf16.msra.mxu0 %v483
    %624 = vmatprep.subr.bf16.mxu0 0
    %625 = vmatpush2.bf16.msra.mxu0 %v482
    %626 = vmatprep.mubr.bf16.mxu0 %v259
    %627 = vmatmul.mubr.bf16.gmra.mxu0 %v258
    %v628 = vpop.f32.mrf.mxu0
    %v629 = vadd.f32 %v589, %v628
    %v630 = vpop.f32.mrf.mxu0
    %v631 = vpop.f32.mrf.mxu0
    %v632 = vpop.f32.mrf.mxu0
    %633 = vdwg.mxu0
    %634 = vmatprep.subr.bf16.mxu0 0
    %635 = vmatpush1.bf16.msra.mxu0 %v497
    %636 = vmatprep.subr.bf16.mxu0 0
    %637 = vmatpush1.bf16.msra.mxu0 %v496
    %638 = vmatprep.subr.bf16.mxu0 0
    %639 = vmatpush1.bf16.msra.mxu0 %v495
    %640 = vmatprep.subr.bf16.mxu0 0
    %641 = vmatpush1.bf16.msra.mxu0 %v494
    %642 = vmatprep.subr.bf16.mxu0 0
    %643 = vmatpush1.bf16.msra.mxu0 %v493
    %644 = vmatprep.subr.bf16.mxu0 0
    %645 = vmatpush1.bf16.msra.mxu0 %v492
    %646 = vmatprep.subr.bf16.mxu0 0
    %647 = vmatpush1.bf16.msra.mxu0 %v491
    %648 = vmatprep.subr.bf16.mxu0 0
    %649 = vmatpush1.bf16.msra.mxu0 %v490
    %650 = vmatprep.subr.bf16.mxu0 0
    %651 = vmatpush2.bf16.msra.mxu0 %v505
    %652 = vmatprep.subr.bf16.mxu0 0
    %653 = vmatpush2.bf16.msra.mxu0 %v504
    %654 = vmatprep.subr.bf16.mxu0 0
    %655 = vmatpush2.bf16.msra.mxu0 %v503
    %656 = vmatprep.subr.bf16.mxu0 0
    %657 = vmatpush2.bf16.msra.mxu0 %v502
    %658 = vmatprep.subr.bf16.mxu0 0
    %659 = vmatpush2.bf16.msra.mxu0 %v501
    %660 = vmatprep.subr.bf16.mxu0 0
    %661 = vmatpush2.bf16.msra.mxu0 %v500
    %662 = vmatprep.subr.bf16.mxu0 0
    %663 = vmatpush2.bf16.msra.mxu0 %v499
    %664 = vmatprep.subr.bf16.mxu0 0
    %665 = vmatpush2.bf16.msra.mxu0 %v498
    %666 = vmatprep.mubr.bf16.mxu0 %v257
    %667 = vmatmul.mubr.bf16.gmra.mxu0 %v243
    %v668 = vpop.f32.mrf.mxu0
    %v669 = vadd.f32 %v629, %v668
    %v670 = vpop.f32.mrf.mxu0
    %v671 = vpop.f32.mrf.mxu0
    %v672 = vpop.f32.mrf.mxu0
    %673 = vdwg.mxu0
    %v674 = vmax.f32 %v669, 0.0
    %v675 = vpack.c.bf16 %v674, %v674
    %v676 = vld [vmem:[#allocation7] sm:$0xf]
    %v677 = vld [vmem:[#allocation7 + $0x4] sm:$0xf]
    %v678 = vld [vmem:[#allocation7 + $0x8] sm:$0xf]
    %v679 = vld [vmem:[#allocation7 + $0xc] sm:$0xf]
    %v680 = vld [vmem:[#allocation7 + $0x10] sm:$0xf]
    %v681 = vld [vmem:[#allocation7 + $0x14] sm:$0xf]
    %v682 = vld [vmem:[#allocation7 + $0x18] sm:$0xf]
    %v683 = vld [vmem:[#allocation7 + $0x1c] sm:$0xf]
    %v684 = vld [vmem:[#allocation7 + $0x20] sm:$0xf]
    %v685 = vld [vmem:[#allocation7 + $0x24] sm:$0xf]
    %v686 = vld [vmem:[#allocation7 + $0x28] sm:$0xf]
    %v687 = vld [vmem:[#allocation7 + $0x2c] sm:$0xf]
    %v688 = vld [vmem:[#allocation7 + $0x30] sm:$0xf]
    %v689 = vld [vmem:[#allocation7 + $0x34] sm:$0xf]
    %v690 = vld [vmem:[#allocation7 + $0x38] sm:$0xf]
    %v691 = vld [vmem:[#allocation7 + $0x3c] sm:$0xf]
    %v692 = vld [vmem:[%s4] sm:$0x1]
    %v694 = vlaneseq
    %v695 = vshrl.u32 %v694, 7
    %v696 = vsub.s32 0, %v695
    %v697 = vrot.slane %v692, %v696
    %v715 = vunpack.c.l.b16 %v676
    %v716 = vunpack.c.l.b16 %v677
    %v717 = vunpack.c.l.b16 %v678
    %v718 = vunpack.c.l.b16 %v679
    %v719 = vunpack.c.l.b16 %v680
    %v720 = vunpack.c.l.b16 %v681
    %v721 = vunpack.c.l.b16 %v682
    %v722 = vunpack.c.l.b16 %v683
    %v723 = vunpack.c.l.b16 %v684
    %v724 = vunpack.c.l.b16 %v685
    %v725 = vunpack.c.l.b16 %v686
    %v726 = vunpack.c.l.b16 %v687
    %v727 = vunpack.c.l.b16 %v688
    %v728 = vunpack.c.l.b16 %v689
    %v729 = vunpack.c.l.b16 %v690
    %v730 = vunpack.c.l.b16 %v691
    %v731 = vpack.c.b16 %v716, %v715
    %v732 = vpack.c.b16 %v718, %v717
    %v733 = vpack.c.b16 %v720, %v719
    %v734 = vpack.c.b16 %v722, %v721
    %v735 = vpack.c.b16 %v724, %v723
    %v736 = vpack.c.b16 %v726, %v725
    %v737 = vpack.c.b16 %v728, %v727
    %v738 = vpack.c.b16 %v730, %v729
    %747 = vmatprep.subr.bf16.mxu0 0
    %748 = vmatpush1.bf16.msra.mxu0 %v738
    %749 = vmatprep.subr.bf16.mxu0 0
    %750 = vmatpush1.bf16.msra.mxu0 %v737
    %751 = vmatprep.subr.bf16.mxu0 0
    %752 = vmatpush1.bf16.msra.mxu0 %v736
    %753 = vmatprep.subr.bf16.mxu0 0
    %754 = vmatpush1.bf16.msra.mxu0 %v735
    %755 = vmatprep.subr.bf16.mxu0 0
    %756 = vmatpush1.bf16.msra.mxu0 %v734
    %757 = vmatprep.subr.bf16.mxu0 0
    %758 = vmatpush1.bf16.msra.mxu0 %v733
    %759 = vmatprep.subr.bf16.mxu0 0
    %760 = vmatpush1.bf16.msra.mxu0 %v732
    %761 = vmatprep.subr.bf16.mxu0 0
    %762 = vmatpush1.bf16.msra.mxu0 %v731
    %763 = vmatprep.subr.bf16.mxu0 0
    %764 = vmatpush2.bf16.msra.mxu0 0
    %765 = vmatprep.subr.bf16.mxu0 0
    %766 = vmatpush2.bf16.msra.mxu0 0
    %767 = vmatprep.subr.bf16.mxu0 0
    %768 = vmatpush2.bf16.msra.mxu0 0
    %769 = vmatprep.subr.bf16.mxu0 0
    %770 = vmatpush2.bf16.msra.mxu0 0
    %771 = vmatprep.subr.bf16.mxu0 0
    %772 = vmatpush2.bf16.msra.mxu0 0
    %773 = vmatprep.subr.bf16.mxu0 0
    %774 = vmatpush2.bf16.msra.mxu0 0
    %775 = vmatprep.subr.bf16.mxu0 0
    %776 = vmatpush2.bf16.msra.mxu0 0
    %777 = vmatprep.subr.bf16.mxu0 0
    %778 = vmatpush2.bf16.msra.mxu0 0
    %779 = vmatprep.mubr.bf16.mxu0 0
    %780 = vmatmul.mubr.bf16.gmra.mxu0 %v675
    %v781 = vpop.f32.mrf.mxu0
    %v782 = vadd.f32 %v697, %v781
    %v783 = vpop.f32.mrf.mxu0
    %v784 = vpop.f32.mrf.mxu0
    %v785 = vpop.f32.mrf.mxu0
    %786 = vdwg.mxu0
    %v787 = vmax.f32 %v782, 0.0
    %v788 = vpack.c.bf16 %v787, %v787
    %v789 = vld [vmem:[#allocation8] sm:$0xf]
    %v790 = vld [vmem:[#allocation8 + $0x4] sm:$0xf]
    %v791 = vld [vmem:[#allocation8 + $0x8] sm:$0xf]
    %v792 = vld [vmem:[#allocation8 + $0xc] sm:$0xf]
    %v793 = vld [vmem:[#allocation8 + $0x10] sm:$0xf]
    %v794 = vld [vmem:[#allocation8 + $0x14] sm:$0xf]
    %v795 = vld [vmem:[#allocation8 + $0x18] sm:$0xf]
    %v796 = vld [vmem:[#allocation8 + $0x1c] sm:$0xf]
    %v797 = vld [vmem:[#allocation8 + $0x20] sm:$0xf]
    %v798 = vld [vmem:[#allocation8 + $0x24] sm:$0xf]
    %v799 = vld [vmem:[#allocation8 + $0x28] sm:$0xf]
    %v800 = vld [vmem:[#allocation8 + $0x2c] sm:$0xf]
    %v801 = vld [vmem:[#allocation8 + $0x30] sm:$0xf]
    %v802 = vld [vmem:[#allocation8 + $0x34] sm:$0xf]
    %v803 = vld [vmem:[#allocation8 + $0x38] sm:$0xf]
    %v804 = vld [vmem:[#allocation8 + $0x3c] sm:$0xf]
    %v805 = vld [vmem:[%s6] sm:$0x1]
    %v807 = vlaneseq
    %v808 = vshrl.u32 %v807, 7
    %v809 = vsub.s32 0, %v808
    %v810 = vrot.slane %v805, %v809
    %v828 = vunpack.c.l.b16 %v789
    %v829 = vunpack.c.l.b16 %v790
    %v830 = vunpack.c.l.b16 %v791
    %v831 = vunpack.c.l.b16 %v792
    %v832 = vunpack.c.l.b16 %v793
    %v833 = vunpack.c.l.b16 %v794
    %v834 = vunpack.c.l.b16 %v795
    %v835 = vunpack.c.l.b16 %v796
    %v836 = vunpack.c.l.b16 %v797
    %v837 = vunpack.c.l.b16 %v798
    %v838 = vunpack.c.l.b16 %v799
    %v839 = vunpack.c.l.b16 %v800
    %v840 = vunpack.c.l.b16 %v801
    %v841 = vunpack.c.l.b16 %v802
    %v842 = vunpack.c.l.b16 %v803
    %v843 = vunpack.c.l.b16 %v804
    %v844 = vpack.c.b16 %v829, %v828
    %v845 = vpack.c.b16 %v831, %v830
    %v846 = vpack.c.b16 %v833, %v832
    %v847 = vpack.c.b16 %v835, %v834
    %v848 = vpack.c.b16 %v837, %v836
    %v849 = vpack.c.b16 %v839, %v838
    %v850 = vpack.c.b16 %v841, %v840
    %v851 = vpack.c.b16 %v843, %v842
    %860 = vmatprep.subr.bf16.mxu0 0
    %861 = vmatpush1.bf16.msra.mxu0 %v851
    %862 = vmatprep.subr.bf16.mxu0 0
    %863 = vmatpush1.bf16.msra.mxu0 %v850
    %864 = vmatprep.subr.bf16.mxu0 0
    %865 = vmatpush1.bf16.msra.mxu0 %v849
    %866 = vmatprep.subr.bf16.mxu0 0
    %867 = vmatpush1.bf16.msra.mxu0 %v848
    %868 = vmatprep.subr.bf16.mxu0 0
    %869 = vmatpush1.bf16.msra.mxu0 %v847
    %870 = vmatprep.subr.bf16.mxu0 0
    %871 = vmatpush1.bf16.msra.mxu0 %v846
    %872 = vmatprep.subr.bf16.mxu0 0
    %873 = vmatpush1.bf16.msra.mxu0 %v845
    %874 = vmatprep.subr.bf16.mxu0 0
    %875 = vmatpush1.bf16.msra.mxu0 %v844
    %876 = vmatprep.subr.bf16.mxu0 0
    %877 = vmatpush2.bf16.msra.mxu0 0
    %878 = vmatprep.subr.bf16.mxu0 0
    %879 = vmatpush2.bf16.msra.mxu0 0
    %880 = vmatprep.subr.bf16.mxu0 0
    %881 = vmatpush2.bf16.msra.mxu0 0
    %882 = vmatprep.subr.bf16.mxu0 0
    %883 = vmatpush2.bf16.msra.mxu0 0
    %884 = vmatprep.subr.bf16.mxu0 0
    %885 = vmatpush2.bf16.msra.mxu0 0
    %886 = vmatprep.subr.bf16.mxu0 0
    %887 = vmatpush2.bf16.msra.mxu0 0
    %888 = vmatprep.subr.bf16.mxu0 0
    %889 = vmatpush2.bf16.msra.mxu0 0
    %890 = vmatprep.subr.bf16.mxu0 0
    %891 = vmatpush2.bf16.msra.mxu0 0
    %892 = vmatprep.mubr.bf16.mxu0 0
    %893 = vmatmul.mubr.bf16.gmra.mxu0 %v788
    %v894 = vpop.f32.mrf.mxu0
    %v895 = vadd.f32 %v810, %v894
    %v896 = vpop.f32.mrf.mxu0
    %v897 = vpop.f32.mrf.mxu0
    %v898 = vpop.f32.mrf.mxu0
    %899 = vdwg.mxu0
    %v900 = vpack.c.bf16 %v895, %v895
    %v903 = vunpack.c.l.s4 1966171168
    %v904 = vunpack.c.0.s8 %v903
    %v905 = vlaneseq
    %v906 = vshrl.u32 %v905, 7
    %v907 = vsub.s32 %v904, %v906
    %v908 = vrot.slane %v900, %v907
    %v909 = vcombine.high %v908, %v908
    %v911 = vunpack.c.l.s4 1966171168
    %v912 = vunpack.c.0.s8 %v911
    %v913 = vlaneseq
    %v914 = vshrl.u32 %v913, 7
    %v915 = vsub.s32 %v912, %v914
    %v916 = vrot.slane %v908, %v915
    %v918 = vunpack.c.l.s4 1966171168
    %v919 = vunpack.c.0.s8 %v918
    %v920 = vlaneseq
    %v921 = vshrl.u32 %v920, 7
    %v922 = vsub.s32 %v919, %v921
    %v923 = vrot.slane %v909, %v922
    %v924 = vcombine.high %v916, %v916
    %v925 = vcombine.high %v923, %v923
    %930 = vst [vmem:[#allocation10] sm:$0x1] %v916
    %931 = vst [vmem:[#allocation10 + $0x1] sm:$0x1] %v923
    %932 = vst [vmem:[#allocation10 + $0x2] sm:$0x1] %v924
    %933 = vst [vmem:[#allocation10 + $0x3] sm:$0x1] %v925
    // Predicated region
    $region46: #{tpu_custom_call.1} parent=1 // pred_check
      _
    $region47: #{tpu_custom_call.1} parent=1 // pred_check_branch
      %935 = sbr.rel (0) target = $region49
    $region48: #{tpu_custom_call.1} parent=1 // pred_region
      %s937 = ssub.s32 64, 16
      %938 = vsyncadd [#allocation4], %s937
      %s939 = sshll.u32 [#allocation10], 4
      %s940 = int_to_ptr.vmem [resolvable:$true] %s939
      %945 = dma.vmem_to_hbm [thread:$0]  %s940, 16, %s7, [#allocation4], 16, 16, 1
    $region49: #{tpu_custom_call.1} parent=1 // pred_fallthru
      _
    // Predicated region
    $region50: #{tpu_custom_call.1} parent=1 // pred_check
      _
    $region51: #{tpu_custom_call.1} parent=1 // pred_check_branch
      %947 = sbr.rel (0) target = $region53
    $region52: #{tpu_custom_call.1} parent=1 // pred_region
      %948 = dma.done [#allocation4], 64
    $region53: #{tpu_custom_call.1} parent=1 // pred_fallthru
      _
    %949 = vsyncpa [#allocation3], 1
    %950 = vsyncpa [#allocation6], 1
    %951 = vsyncpa [#allocation9], 1
    %952 = vsyncpa [#allocation4], 1

</llo_original>
